<compile_context>
chip_gen: v7x
topology: tpu7x:2x2x1
jax: 0.10.0
libtpu: 0.0.40
codegen_flags: <defaults>
</compile_context>

<pallas_src>
import functools

import jax
import jax.numpy as jnp
from jax.experimental import pallas as pl
from jax.experimental.pallas import tpu as pltpu


# --------------------------------------------------------------------------
# Tile sizing helpers (per TPU generation).
# --------------------------------------------------------------------------
def _hw_params():
    kind = ""
    try:
        kind = jax.devices()[0].device_kind.lower()
    except Exception:
        pass
    if "v7" in kind:
        # 3.2 TB/s HBM -> need ~8 MiB per step to hide the ~0.35 us fixed cost;
        # physical VMEM is only 64 MiB, so cap the scoped limit at 48 MiB.
        return {"step_bytes": 8 << 20, "vmem_limit": 48 << 20}
    if "v5e" in kind or "v5 lite" in kind or "v5lite" in kind:
        # ~0.8 TB/s HBM: ~2 MiB per step is already near roofline.
        return {"step_bytes": 2 << 20, "vmem_limit": 64 << 20}
    # v6e / v5p / unknown default.
    return {"step_bytes": 4 << 20, "vmem_limit": 64 << 20}


def _round_down8(v):
    return max(8, (v // 8) * 8)


def _pick_tf(f):
    """Feature tile: full F when small/ragged, else a 128-multiple divisor."""
    if f % 128 != 0 or f <= 2048:
        return f
    for tf in range(2048, 127, -128):
        if f % tf == 0:
            return tf
    return f


def _pick_tn(n, tf, itemsize, step_bytes, vmem_limit):
    """Node tile: hit the per-step byte target, stay under the VMEM cap."""
    by_target = step_bytes // (tf * itemsize)
    # Double-buffered input block; keep ~50% VMEM headroom for out/acc/etc.
    by_vmem = (vmem_limit // 2) // (2 * tf * itemsize)
    tn = max(8, min(by_target, by_vmem))
    tn = _round_down8(tn)
    tn = min(tn, _round_down8(n))
    return tn


# --------------------------------------------------------------------------
# Kernel.
# --------------------------------------------------------------------------
def _vsum_kernel(x_ref, o_ref, acc_ref, *, n_valid, tn):
    """Grid = (batch, feature_tiles, node_tiles); node axis last ("arbitrary")."""
    k = pl.program_id(2)

    @pl.when(k == 0)
    def _():
        acc_ref[...] = jnp.zeros_like(acc_ref)

    # x_ref block is (1, tn, tf); accumulate in wide dtype (f32 for floats).
    xv = x_ref[...].astype(acc_ref.dtype)
    tf = xv.shape[-1]

    is_full = (k + 1) * tn <= n_valid

    @pl.when(is_full)
    def _():
        # Pure aligned VPU adds: collapse groups of 8 sublanes into the
        # (1, 8, tf) accumulator, no cross-sublane traffic per step.
        acc_ref[...] += xv.reshape(1, tn // 8, 8, tf).sum(axis=1)

    @pl.when(jnp.logical_not(is_full))
    def _():
        # Ragged tail tile: zero rows beyond the real node count (replaces the
        # old wrapper-side jnp.pad, which doubled HBM traffic).
        rows_left = n_valid - k * tn
        row = jax.lax.broadcasted_iota(jnp.int32, (1, tn, 1), 1)
        xm = jnp.where(row < rows_left, xv, 0)
        acc_ref[...] += xm.reshape(1, tn // 8, 8, tf).sum(axis=1)

    @pl.when(k == pl.num_programs(2) - 1)
    def _():
        # Single 8 -> 1 cross-sublane reduce + cast, once per (batch, f-tile).
        o_ref[...] = acc_ref[...].sum(axis=1, keepdims=True).astype(o_ref.dtype)


# --------------------------------------------------------------------------
# Wrappers.
# --------------------------------------------------------------------------
def vertical_sum_batched(x, *, tn=None, tf=None):
    """x: (B, N, F). Returns (B, F) with out[b] = x[b].sum(axis=0)."""
    b, n, f = x.shape
    if n == 0:
        return jnp.zeros((b, f), dtype=x.dtype)

    hw = _hw_params()
    itemsize = jnp.dtype(x.dtype).itemsize

    if tf is None:
        tf = _pick_tf(f)
    elif tf % 128 != 0 or f % tf != 0:
        tf = f

    if tn is None:
        tn = _pick_tn(n, tf, itemsize, hw["step_bytes"], hw["vmem_limit"])
    else:
        tn = _round_down8(min(tn, _round_down8(n)))

    # Wide accumulation dtype (f32 for floats, i32 for integer features).
    acc_dtype = jnp.float32 if jnp.issubdtype(x.dtype, jnp.floating) else jnp.int32

    kt = pl.cdiv(n, tn)
    grid = (b, f // tf, kt)

    out = pl.pallas_call(
        functools.partial(_vsum_kernel, n_valid=n, tn=tn),
        out_shape=jax.ShapeDtypeStruct((b, 1, f), x.dtype),
        grid_spec=pltpu.PrefetchScalarGridSpec(
            num_scalar_prefetch=0,
            grid=grid,
            in_specs=[pl.BlockSpec((1, tn, tf), lambda bi, fi, ki: (bi, ki, fi))],
            out_specs=pl.BlockSpec((1, 1, tf), lambda bi, fi, ki: (bi, 0, fi)),
            scratch_shapes=[pltpu.VMEM((1, 8, tf), acc_dtype)],
        ),
        compiler_params=pltpu.CompilerParams(
            dimension_semantics=("parallel", "parallel", "arbitrary"),
            vmem_limit_bytes=hw["vmem_limit"],
        ),
    )(x)
    return out.reshape(b, f)


def vertical_sum(x, *, tn=None, tf=None, force_kernel=False):
    """Exact module semantics: x (N, F) -> x.sum(dim=0) of shape (F,)."""
    n, f = x.shape
    if n == 0:
        return jnp.zeros((f,), dtype=x.dtype)

    # Tiny problems: kernel dispatch + pipeline warm-up exceeds the whole HBM
    # transfer, so just let XLA do it.
    if not force_kernel and x.size * jnp.dtype(x.dtype).itemsize < (256 << 10):
        return jnp.sum(x, axis=0)

    # Large single graph: split the node axis across a leading "parallel" grid
    # axis (free reshape, no copy) so v7x's second TensorCore gets work; add
    # the two partial sums in the wrapper.
    n_split = 2
    if n % n_split == 0 and (n // n_split) >= 1024:
        parts = vertical_sum_batched(
            x.reshape(n_split, n // n_split, f), tn=tn, tf=tf
        )
        return jnp.sum(parts.astype(jnp.float32), axis=0).astype(x.dtype)

    return vertical_sum_batched(x[None], tn=tn, tf=tf)[0]


# --------------------------------------------------------------------------
# Demo / self-test.
# --------------------------------------------------------------------------
if __name__ == "__main__":
    key = jax.random.PRNGKey(0)
    k1, k2, k3 = jax.random.split(key, 3)

    # Batched path, ragged node count (N not a multiple of any tile) so the
    # in-kernel tail mask is exercised; lane-dense F=128.
    B, N, F = 4, 300, 128
    xb = jax.random.normal(k1, (B, N, F), dtype=jnp.float32)
    refb = jnp.sum(xb, axis=1)

    outb = jax.block_until_ready(vertical_sum_batched(xb))
    assert outb.shape == (B, F)
    assert jnp.allclose(outb, refb, atol=1e-3, rtol=1e-5)

    # Same data with a forced small node tile -> multi-step reduction path
    # (accumulator init / accumulate / finalize across 5 grid steps).
    outb_small = jax.block_until_ready(vertical_sum_batched(xb, tn=64))
    assert jnp.allclose(outb_small, refb, atol=1e-3, rtol=1e-5)

    # bf16 streams through HBM at native width; f32 accumulation inside.
    xb16 = xb.astype(jnp.bfloat16)
    out16 = jax.block_until_ready(vertical_sum_batched(xb16))
    ref16 = jnp.sum(xb16.astype(jnp.float32), axis=1)
    assert jnp.allclose(out16.astype(jnp.float32), ref16, atol=0.5, rtol=5e-2)

    # Single-graph module semantics, large even N -> node-axis core split path.
    x_big = jax.random.normal(k2, (2048, F), dtype=jnp.float32)
    out_big = jax.block_until_ready(vertical_sum(x_big))
    assert out_big.shape == (F,)
    assert jnp.allclose(out_big, jnp.sum(x_big, axis=0), atol=1e-3, rtol=1e-5)

    # Single-graph tiny input -> short-circuits to plain jnp.sum.
    x_small = jax.random.normal(k3, (64, F), dtype=jnp.float32)
    out_small = jax.block_until_ready(vertical_sum(x_small))
    assert out_small.shape == (F,)
    assert jnp.allclose(out_small, jnp.sum(x_small, axis=0), atol=1e-5)

    print("KERNEL_OK")
</pallas_src>

<mosaic_0001>
module attributes {stable_mosaic.version = 11 : i64} {
  func.func @_vsum_kernel(%arg0: i32, %arg1: i32, %arg2: i32, %arg3: memref<1x296x128xf32, #tpu.memory_space<vmem>>, %arg4: memref<1x1x128xf32, #tpu.memory_space<vmem>>, %arg5: memref<1x8x128xf32, #tpu.memory_space<vmem>>) attributes {dimension_semantics = [#tpu.dimension_semantics<parallel>, #tpu.dimension_semantics<parallel>, #tpu.dimension_semantics<arbitrary>], iteration_bounds = array<i64: 4, 1, 2>, scalar_prefetch = 0 : i64, scratch_operands = 1 : i64, tpu.core_type = #tpu.core_type<tc>, window_params = [{transform_indices = @transform_0, window_bounds = array<i64: 1, 296, 128>}, {transform_indices = @transform_1, window_bounds = array<i64: 1, 1, 128>}]} {
    %c0_i32 = arith.constant 0 : i32
    %0 = arith.cmpi eq, %arg2, %c0_i32 : i32
    %1 = arith.extui %0 : i1 to i32
    %c0_i32_0 = arith.constant 0 : i32
    %2 = arith.cmpi ne, %1, %c0_i32_0 : i32
    scf.if %2 {
      %cst = arith.constant 0.000000e+00 : f32
      %15 = vector.broadcast %cst : f32 to vector<1x8x128xf32>
      %c0_7 = arith.constant 0 : index
      %c0_8 = arith.constant 0 : index
      %c0_9 = arith.constant 0 : index
      %16 = vector.load %arg5[%c0_7, %c0_8, %c0_9] : memref<1x8x128xf32, #tpu.memory_space<vmem>>, vector<1x8x128xf32>
      tpu.vector_store %arg5[%c0_7, %c0_8, %c0_9], %15 {strides = array<i32>} : memref<1x8x128xf32, #tpu.memory_space<vmem>>, vector<1x8x128xf32>,
    } else {
    }
    %c0 = arith.constant 0 : index
    %c0_1 = arith.constant 0 : index
    %c0_2 = arith.constant 0 : index
    %3 = vector.load %arg3[%c0, %c0_1, %c0_2] : memref<1x296x128xf32, #tpu.memory_space<vmem>>, vector<1x296x128xf32>
    %c1_i32 = arith.constant 1 : i32
    %4 = arith.addi %arg2, %c1_i32 : i32
    %c296_i32 = arith.constant 296 : i32
    %5 = arith.muli %4, %c296_i32 : i32
    %c300_i32 = arith.constant 300 : i32
    %6 = arith.cmpi sle, %5, %c300_i32 : i32
    %7 = arith.extui %6 : i1 to i32
    %c0_i32_3 = arith.constant 0 : i32
    %8 = arith.cmpi ne, %7, %c0_i32_3 : i32
    scf.if %8 {
      %c0_7 = arith.constant 0 : index
      %c0_8 = arith.constant 0 : index
      %c0_9 = arith.constant 0 : index
      %15 = vector.load %arg5[%c0_7, %c0_8, %c0_9] : memref<1x8x128xf32, #tpu.memory_space<vmem>>, vector<1x8x128xf32>
      %16 = vector.shape_cast %3 : vector<1x296x128xf32> to vector<1x37x8x128xf32>
      %cst = arith.constant dense<0.000000e+00> : vector<1x8x128xf32>
      %17 = vector.multi_reduction <add>, %16, %cst [1] : vector<1x37x8x128xf32> to vector<1x8x128xf32>
      %18 = arith.addf %15, %17 : vector<1x8x128xf32>
      %c0_10 = arith.constant 0 : index
      %c0_11 = arith.constant 0 : index
      %c0_12 = arith.constant 0 : index
      %19 = vector.load %arg5[%c0_10, %c0_11, %c0_12] : memref<1x8x128xf32, #tpu.memory_space<vmem>>, vector<1x8x128xf32>
      tpu.vector_store %arg5[%c0_10, %c0_11, %c0_12], %18 {strides = array<i32>} : memref<1x8x128xf32, #tpu.memory_space<vmem>>, vector<1x8x128xf32>,
    } else {
    }
    %true = arith.constant true
    %9 = arith.xori %6, %true : i1
    %10 = arith.extui %9 : i1 to i32
    %c0_i32_4 = arith.constant 0 : i32
    %11 = arith.cmpi ne, %10, %c0_i32_4 : i32
    scf.if %11 {
      %c296_i32_7 = arith.constant 296 : i32
      %15 = arith.muli %arg2, %c296_i32_7 : i32
      %c300_i32_8 = arith.constant 300 : i32
      %16 = arith.subi %c300_i32_8, %15 : i32
      %17 = tpu.iota {dimensions = array<i32: 1>} : vector<1x296x1xi32>
      %18 = vector.broadcast %16 : i32 to vector<1x296x1xi32>
      %19 = arith.cmpi slt, %17, %18 : vector<1x296x1xi32>
      %c0_i32_9 = arith.constant 0 : i32
      %20 = arith.sitofp %c0_i32_9 : i32 to f32
      %21 = vector.shape_cast %19 : vector<1x296x1xi1> to vector<1x296x1xi1>
      %22 = vector.broadcast %21 : vector<1x296x1xi1> to vector<1x296x128xi1>
      %23 = vector.broadcast %20 : f32 to vector<1x296x128xf32>
      %24 = arith.select %22, %3, %23 : vector<1x296x128xi1>, vector<1x296x128xf32>
      %c0_10 = arith.constant 0 : index
      %c0_11 = arith.constant 0 : index
      %c0_12 = arith.constant 0 : index
      %25 = vector.load %arg5[%c0_10, %c0_11, %c0_12] : memref<1x8x128xf32, #tpu.memory_space<vmem>>, vector<1x8x128xf32>
      %26 = vector.shape_cast %24 : vector<1x296x128xf32> to vector<1x37x8x128xf32>
      %cst = arith.constant dense<0.000000e+00> : vector<1x8x128xf32>
      %27 = vector.multi_reduction <add>, %26, %cst [1] : vector<1x37x8x128xf32> to vector<1x8x128xf32>
      %28 = arith.addf %25, %27 : vector<1x8x128xf32>
      %c0_13 = arith.constant 0 : index
      %c0_14 = arith.constant 0 : index
      %c0_15 = arith.constant 0 : index
      %29 = vector.load %arg5[%c0_13, %c0_14, %c0_15] : memref<1x8x128xf32, #tpu.memory_space<vmem>>, vector<1x8x128xf32>
      tpu.vector_store %arg5[%c0_13, %c0_14, %c0_15], %28 {strides = array<i32>} : memref<1x8x128xf32, #tpu.memory_space<vmem>>, vector<1x8x128xf32>,
    } else {
    }
    %c1_i32_5 = arith.constant 1 : i32
    %12 = arith.cmpi eq, %arg2, %c1_i32_5 : i32
    %13 = arith.extui %12 : i1 to i32
    %c0_i32_6 = arith.constant 0 : i32
    %14 = arith.cmpi ne, %13, %c0_i32_6 : i32
    scf.if %14 {
      %c0_7 = arith.constant 0 : index
      %c0_8 = arith.constant 0 : index
      %c0_9 = arith.constant 0 : index
      %15 = vector.load %arg5[%c0_7, %c0_8, %c0_9] : memref<1x8x128xf32, #tpu.memory_space<vmem>>, vector<1x8x128xf32>
      %cst = arith.constant dense<0.000000e+00> : vector<1x128xf32>
      %16 = vector.multi_reduction <add>, %15, %cst [1] : vector<1x8x128xf32> to vector<1x128xf32>
      %17 = vector.shape_cast %16 : vector<1x128xf32> to vector<1x1x128xf32>
      %c0_10 = arith.constant 0 : index
      %c0_11 = arith.constant 0 : index
      %c0_12 = arith.constant 0 : index
      %18 = vector.load %arg4[%c0_10, %c0_11, %c0_12] : memref<1x1x128xf32, #tpu.memory_space<vmem>>, vector<1x1x128xf32>
      tpu.vector_store %arg4[%c0_10, %c0_11, %c0_12], %17 {strides = array<i32>} : memref<1x1x128xf32, #tpu.memory_space<vmem>>, vector<1x1x128xf32>,
    } else {
    }
    return
  }
  func.func @transform_0(%arg0: i32, %arg1: i32, %arg2: i32) -> (i32, i32, i32) {
    %c0_i32 = arith.constant 0 : i32
    return %arg0, %arg2, %arg1 : i32, i32, i32
  }
  func.func @transform_1(%arg0: i32, %arg1: i32, %arg2: i32) -> (i32, i32, i32) {
    %c0_i32 = arith.constant 0 : i32
    %c0_i32_0 = arith.constant 0 : i32
    return %arg0, %c0_i32, %arg1 : i32, i32, i32
  }
}

</mosaic_0001>

<llo_original>
// kernel: tpu_custom_call.1
$region0: #{tpu_custom_call.1}
  #allocation0 [shape = 'u32[]', space=smem, size = 0x4, offset = 0x4, fixed_abs, tag = 'smem constant byte address 0x4 - core index']
  #allocation1 [shape = 'u32[144,128]{1,0:T(1,128)}', space=vmem, size = 0x12000, scoped, tag = 'internal scratch']
  #allocation2 [shape = 'f32[1,8,128]{2,1,0:T(8,128)}', space=vmem, size = 0x1000, scoped, tag = 'scratch operand']
  %s0 = inlined_call_operand.hbm [shape: f32[4,300,128], index: 0, kind: input, shape index: {}]
  %s1 = inlined_call_operand.hbm [shape: f32[4,1,128], index: 1, kind: output, shape index: {}]
  %s2 = sld [smem:[#allocation0]]
  $region57: #{tpu_custom_call.1} parent=0
    _
  %s4 = ssub.s32 1, %s2
  %s5 = scalar_select 0, %s4, %s2
  $region1: #{tpu_custom_call.1} parent=0
    #allocation3 [shape = 'u8[303104]{0}', space=vmem, size = 0x4a000, scoped, tag = 'input window, operand 0']
    #allocation4 [shape = 's32[2]{0}', space=sflag, size = 0x8, scoped, tag = 'scoped memory for tpu_custom_call.1']
    #allocation5 [shape = 's32[2]{0}', space=sflag, size = 0x8, scoped, tag = 'scoped memory for tpu_custom_call.1']
    #allocation6 [shape = 'u8[1024]{0}', space=vmem, size = 0x400, scoped, tag = 'output window, operand 0']
    %6 = vsyncpa [#allocation4], 0
    %s7 = scalar_lea.sflag [#allocation4], 1
    %8 = vsyncpa %s7, 0
    %9 = vsyncpa [#allocation5], 0
    %s10 = scalar_lea.sflag [#allocation5], 1
    %11 = vsyncpa %s10, 0
    loop: start=0, step=1, limit=10
    $region2: #{tpu_custom_call.1} parent=1 // loop_pre_header
      _
    $region3: #{tpu_custom_call.1} parent=1 // loop_header
      %s13 = sphi 0, %s17
      %p14 = scmp.ge.s32.totalorder %s13, 10
      %s20 = sphi 0, %s39
      %s21 = sphi 0, %s35
      %s22 = sphi 0, %s31
      %s23 = sphi 0, %s20
      %s24 = sphi 0, %s21
      %s25 = sphi 0, %s22
      %s26 = sphi 0, %s23
      %s27 = sphi 0, %s24
      %s28 = sphi 0, %s25
      %s46 = sphi 0, %s48
      %s49 = sphi 0, %s46
      %s50 = sphi 0, %s49
      %s66 = sphi 0, %s50
      %s74 = sphi 0, %s76
      %s77 = sphi 0, %s74
      %s78 = sphi 0, %s77
      %s94 = sphi 0, %s78
    $region4: #{tpu_custom_call.1} parent=1 // loop_header_branch
      %16 = sbr.rel (%p14) target = $region8
    $region5: #{tpu_custom_call.1} parent=1 // loop_body
      %s18 = ssub.s32 %s13, 1
      %s19 = ssub.s32 %s13, 2
      %s29 = sadd.s32 1, %s22
      %p30 = scmp.ge.s32.totalorder %s29, 2
      %s31 = scalar_select %p30, 0, %s29
      %s32 = sadd.s32 1, %s21
      %s33 = scalar_select %p30, %s32, %s21
      %p34 = scmp.ge.s32.totalorder %s33, 1
      %s35 = scalar_select %p34, 0, %s33
      %s36 = sadd.s32 1, %s20
      %s37 = scalar_select %p34, %s36, %s20
      %p38 = scmp.ge.s32.totalorder %s37, 4
      %s39 = scalar_select %p38, 0, %s37
      %s40 = ssub.s32 %s20, %s39
      %s41 = ssub.s32 %s22, %s31
      %s42 = sor.u32 %s40, %s41
      %s43 = ssub.s32 %s21, %s35
      %s44 = sor.u32 %s42, %s43
      %p45 = scmp.eq.s32.totalorder %s44, 0
      %s47 = sadd.s32 %s46, 1
      %s48 = scalar_select %p45, %s46, %s47
      %p51 = pneg %p45
      %p52 = scmp.eq.s32.totalorder %s13, 7
      %p53 = por %p51, %p52
      %p54 = scmp.ne.s32.totalorder %s46, %s49
      %p55 = scmp.eq.s32.totalorder %s13, 0
      %p56 = por %p54, %p55
      %p57 = scmp.ne.s32.totalorder %s46, %s49
      %p58 = scmp.eq.s32.totalorder %s18, 7
      %p59 = por %p57, %p58
      %p60 = scmp.ne.s32.totalorder %s49, %s50
      %p61 = scmp.eq.s32.totalorder %s18, 0
      %p62 = por %p60, %p61
      %p63 = scmp.ne.s32.totalorder %s49, %s50
      %p64 = scmp.eq.s32.totalorder %s19, 7
      %p65 = por %p63, %p64
      %p67 = scmp.ne.s32.totalorder %s50, %s66
      %p68 = scmp.eq.s32.totalorder %s19, 0
      %p69 = por %p67, %p68
      %s70 = ssub.s32 %s20, %s39
      %s71 = ssub.s32 %s21, %s35
      %s72 = sor.u32 %s70, %s71
      %p73 = scmp.eq.s32.totalorder %s72, 0
      %s75 = sadd.s32 %s74, 1
      %s76 = scalar_select %p73, %s74, %s75
      %p79 = pneg %p73
      %p80 = scmp.eq.s32.totalorder %s13, 7
      %p81 = por %p79, %p80
      %p82 = scmp.ne.s32.totalorder %s74, %s77
      %p83 = scmp.eq.s32.totalorder %s13, 0
      %p84 = por %p82, %p83
      %p85 = scmp.ne.s32.totalorder %s74, %s77
      %p86 = scmp.eq.s32.totalorder %s18, 7
      %p87 = por %p85, %p86
      %p88 = scmp.ne.s32.totalorder %s77, %s78
      %p89 = scmp.eq.s32.totalorder %s18, 0
      %p90 = por %p88, %p89
      %p91 = scmp.ne.s32.totalorder %s77, %s78
      %p92 = scmp.eq.s32.totalorder %s19, 7
      %p93 = por %p91, %p92
      %p95 = scmp.ne.s32.totalorder %s78, %s94
      %p96 = scmp.eq.s32.totalorder %s19, 0
      %p97 = por %p95, %p96
      %p98 = scmp.le.s32.totalorder 1, %s13
      %p99 = scmp.lt.s32.totalorder %s13, 9
      %p100 = pnand %p98, %p99
      %p101 = pneg %p100
      // Predicated region
      $region9: #{tpu_custom_call.1} parent=5 // pred_check
        _
      $region10: #{tpu_custom_call.1} parent=5 // pred_check_branch
        %103 = sbr.rel (%p100) target = $region12
      $region11: #{tpu_custom_call.1} parent=5 // pred_region
        %s104 = ssub.s32 %s13, 1
      $region12: #{tpu_custom_call.1} parent=5 // pred_fallthru
        _
      %p105 = scmp.lt.s32.totalorder %s13, 8
      // Predicated region
      $region13: #{tpu_custom_call.1} parent=5 // pred_check
        %p106 = pneg %p105
      $region14: #{tpu_custom_call.1} parent=5 // pred_check_branch
        %108 = sbr.rel (%p106) target = $region16
      $region15: #{tpu_custom_call.1} parent=5 // pred_region
        // Predicated region
        $region17: #{tpu_custom_call.1} parent=15 // pred_check
          %p109 = pneg %p56
        $region18: #{tpu_custom_call.1} parent=15 // pred_check_branch
          %111 = sbr.rel (%p109) target = $region20
        $region19: #{tpu_custom_call.1} parent=15 // pred_region
          %s112 = sand.u32 %s46, 1
          %s113 = scalar_lea.sflag [#allocation4], %s112
          %s114 = sand.u32 %s46, 1
          %s115 = smul.addr %s114, 296
          %s116 = scalar_lea.vmem [#allocation3], %s115
          %s117 = smul.u32 37, %s22
          %s118 = ssub.s32 38, %s117
          %p119 = scmp.lt.s32.totalorder %s118, 37
          %s120 = scalar_select %p119, %s118, 37
          %s121 = smul.u32 128, %s120
          %s123 = ssub.s32 4736, %s121
          %124 = vsyncadd %s113, %s123
          %p125 = scmp.ne.s32.totalorder 0, %s121
          %s126 = sadd.s32 %s21, %s117
          %s127 = smul.addr %s20, 38
          %s128 = sadd.s32 %s126, %s127
          %s129 = smul.addr %s128, 128
          %s130 = scalar_lea.hbm %s0, %s129
          %s131 = smul.u32 8, %s120
          %s132 = sshll.u32 %s116, 4
          %s133 = int_to_ptr.vmem [resolvable:$true] %s132
          %s134 = sshll.u32 %s131, 4
          %138 = dma.hbm_to_vmem [thread:$0]  (%p125), %s130, %s134, %s133, %s113, 128, 128, 8
        $region20: #{tpu_custom_call.1} parent=15 // pred_fallthru
          _
      $region16: #{tpu_custom_call.1} parent=5 // pred_fallthru
        _
      %p139 = scmp.le.s32.totalorder 1, %s13
      %p140 = scmp.lt.s32.totalorder %s13, 9
      %p141 = pnand %p139, %p140
      %p142 = pneg %p141
      // Predicated region
      $region21: #{tpu_custom_call.1} parent=5 // pred_check
        _
      $region22: #{tpu_custom_call.1} parent=5 // pred_check_branch
        %144 = sbr.rel (%p141) target = $region24
      $region23: #{tpu_custom_call.1} parent=5 // pred_region
        %s145 = ssub.s32 %s13, 1
        %s146 = sand.u32 %s49, 1
        %s147 = scalar_lea.sflag [#allocation4], %s146
        %s148 = sand.u32 %s49, 1
        %s149 = smul.addr %s148, 296
        %s150 = scalar_lea.vmem [#allocation3], %s149
        // Predicated region
        $region25: #{tpu_custom_call.1} parent=23 // pred_check
          %p151 = pneg %p62
        $region26: #{tpu_custom_call.1} parent=23 // pred_check_branch
          %153 = sbr.rel (%p151) target = $region28
        $region27: #{tpu_custom_call.1} parent=23 // pred_region
          %154 = dma.done %s147, 4736
        $region28: #{tpu_custom_call.1} parent=23 // pred_fallthru
          _
        %s155 = sand.u32 %s49, 1
        %s156 = scalar_lea.sflag [#allocation4], %s155
        %s157 = sand.u32 %s49, 1
        %s158 = smul.addr %s157, 296
        %s159 = scalar_lea.vmem [#allocation3], %s158
        %p160 = pneg %p62
        %p161 = pneg %p59
        %p162 = pneg %p90
        %p163 = pneg %p87
        %s164 = sand.u32 %s77, 1
        %s165 = scalar_lea.sflag [#allocation5], %s164
        %s166 = sand.u32 %s77, 1
        %s167 = scalar_lea.vmem [#allocation6], %s166
        %s168 = smul.u32 37, %s25
        %s169 = ssub.s32 38, %s168
        %p170 = scmp.lt.s32.totalorder %s169, 37
        %s171 = scalar_select %p170, %s169, 37
        %s172 = smul.u32 128, %s171
        %p173 = scmp.eq.s32.totalorder %s25, 0
        // Predicated region
        $region29: #{tpu_custom_call.1} parent=23 // pred_check
          %p174 = pneg %p173
        $region30: #{tpu_custom_call.1} parent=23 // pred_check_branch
          %176 = sbr.rel (%p174) target = $region32
        $region31: #{tpu_custom_call.1} parent=23 // pred_region
          %177 = vst [vmem:[#allocation2] sm:$0xff] 0.0
        $region32: #{tpu_custom_call.1} parent=23 // pred_fallthru
          _
        %v178 = vld [vmem:[%s150] sm:$0xff]
        %v179 = vld [vmem:[%s150 + $0x8] sm:$0xff]
        %v180 = vld [vmem:[%s150 + $0x10] sm:$0xff]
        %v181 = vld [vmem:[%s150 + $0x18] sm:$0xff]
        %v182 = vld [vmem:[%s150 + $0x20] sm:$0xff]
        %v183 = vld [vmem:[%s150 + $0x28] sm:$0xff]
        %v184 = vld [vmem:[%s150 + $0x30] sm:$0xff]
        %v185 = vld [vmem:[%s150 + $0x38] sm:$0xff]
        %v186 = vld [vmem:[%s150 + $0x40] sm:$0xff]
        %v187 = vld [vmem:[%s150 + $0x48] sm:$0xff]
        %v188 = vld [vmem:[%s150 + $0x50] sm:$0xff]
        %v189 = vld [vmem:[%s150 + $0x58] sm:$0xff]
        %v190 = vld [vmem:[%s150 + $0x60] sm:$0xff]
        %v191 = vld [vmem:[%s150 + $0x68] sm:$0xff]
        %v192 = vld [vmem:[%s150 + $0x70] sm:$0xff]
        %v193 = vld [vmem:[%s150 + $0x78] sm:$0xff]
        %v194 = vld [vmem:[%s150 + $0x80] sm:$0xff]
        %v195 = vld [vmem:[%s150 + $0x88] sm:$0xff]
        %v196 = vld [vmem:[%s150 + $0x90] sm:$0xff]
        %v197 = vld [vmem:[%s150 + $0x98] sm:$0xff]
        %v198 = vld [vmem:[%s150 + $0xa0] sm:$0xff]
        %v199 = vld [vmem:[%s150 + $0xa8] sm:$0xff]
        %v200 = vld [vmem:[%s150 + $0xb0] sm:$0xff]
        %v201 = vld [vmem:[%s150 + $0xb8] sm:$0xff]
        %v202 = vld [vmem:[%s150 + $0xc0] sm:$0xff]
        %v203 = vld [vmem:[%s150 + $0xc8] sm:$0xff]
        %v204 = vld [vmem:[%s150 + $0xd0] sm:$0xff]
        %v205 = vld [vmem:[%s150 + $0xd8] sm:$0xff]
        %v206 = vld [vmem:[%s150 + $0xe0] sm:$0xff]
        %v207 = vld [vmem:[%s150 + $0xe8] sm:$0xff]
        %v208 = vld [vmem:[%s150 + $0xf0] sm:$0xff]
        %v209 = vld [vmem:[%s150 + $0xf8] sm:$0xff]
        %v210 = vld [vmem:[%s150 + $0x100] sm:$0xff]
        %v211 = vld [vmem:[%s150 + $0x108] sm:$0xff]
        %v212 = vld [vmem:[%s150 + $0x110] sm:$0xff]
        %v213 = vld [vmem:[%s150 + $0x118] sm:$0xff]
        %v214 = vld [vmem:[%s150 + $0x120] sm:$0xff]
        %s215 = sadd.s32 %s25, 1
        %s216 = smul.u32 %s215, 296
        %p217 = scmp.le.s32.totalorder %s216, 300
        // Predicated region
        $region33: #{tpu_custom_call.1} parent=23 // pred_check
          %p218 = pneg %p217
        $region34: #{tpu_custom_call.1} parent=23 // pred_check_branch
          %220 = sbr.rel (%p218) target = $region36
        $region35: #{tpu_custom_call.1} parent=23 // pred_region
          %v221 = vld [vmem:[#allocation2] sm:$0xff]
          %v222 = vadd.f32 %v178, %v179
          %v223 = vadd.f32 %v222, %v180
          %v224 = vadd.f32 %v223, %v181
          %v225 = vadd.f32 %v224, %v182
          %v226 = vadd.f32 %v225, %v183
          %v227 = vadd.f32 %v226, %v184
          %v228 = vadd.f32 %v227, %v185
          %v229 = vadd.f32 %v228, %v186
          %v230 = vadd.f32 %v229, %v187
          %v231 = vadd.f32 %v230, %v188
          %v232 = vadd.f32 %v231, %v189
          %v233 = vadd.f32 %v232, %v190
          %v234 = vadd.f32 %v233, %v191
          %v235 = vadd.f32 %v234, %v192
          %v236 = vadd.f32 %v235, %v193
          %v237 = vadd.f32 %v236, %v194
          %v238 = vadd.f32 %v237, %v195
          %v239 = vadd.f32 %v238, %v196
          %v240 = vadd.f32 %v239, %v197
          %v241 = vadd.f32 %v240, %v198
          %v242 = vadd.f32 %v241, %v199
          %v243 = vadd.f32 %v242, %v200
          %v244 = vadd.f32 %v243, %v201
          %v245 = vadd.f32 %v244, %v202
          %v246 = vadd.f32 %v245, %v203
          %v247 = vadd.f32 %v246, %v204
          %v248 = vadd.f32 %v247, %v205
          %v249 = vadd.f32 %v248, %v206
          %v250 = vadd.f32 %v249, %v207
          %v251 = vadd.f32 %v250, %v208
          %v252 = vadd.f32 %v251, %v209
          %v253 = vadd.f32 %v252, %v210
          %v254 = vadd.f32 %v253, %v211
          %v255 = vadd.f32 %v254, %v212
          %v256 = vadd.f32 %v255, %v213
          %v257 = vadd.f32 %v256, %v214
          %v258 = vadd.f32 %v221, %v257
          %259 = vst [vmem:[#allocation2] sm:$0xff] %v258
        $region36: #{tpu_custom_call.1} parent=23 // pred_fallthru
          _
        %p260 = scmp.gt.s32.totalorder %s216, 300
        // Predicated region
        $region37: #{tpu_custom_call.1} parent=23 // pred_check
          %p261 = pneg %p260
        $region38: #{tpu_custom_call.1} parent=23 // pred_check_branch
          %263 = sbr.rel (%p261) target = $region40
        $region39: #{tpu_custom_call.1} parent=23 // pred_region
          %s264 = smul.u32 %s25, 296
          %s265 = ssub.s32 300, %s264
          %v266 = vlaneseq
          %v267 = vshrl.u32 %v266, 7
          %v268 = vadd.s32 %v267, 8
          %v269 = vadd.s32 %v267, 16
          %v270 = vadd.s32 %v267, 24
          %v271 = vadd.s32 %v267, 32
          %v272 = vadd.s32 %v267, 40
          %v273 = vadd.s32 %v267, 48
          %v274 = vadd.s32 %v267, 56
          %v275 = vadd.s32 %v267, 64
          %v276 = vadd.s32 %v267, 72
          %v277 = vadd.s32 %v267, 80
          %v278 = vadd.s32 %v267, 88
          %v279 = vadd.s32 %v267, 96
          %v280 = vadd.s32 %v267, 104
          %v281 = vadd.s32 %v267, 112
          %v282 = vadd.s32 %v267, 120
          %v283 = vadd.s32 %v267, 128
          %v284 = vadd.s32 %v267, 136
          %v285 = vadd.s32 %v267, 144
          %v286 = vadd.s32 %v267, 152
          %v287 = vadd.s32 %v267, 160
          %v288 = vadd.s32 %v267, 168
          %v289 = vadd.s32 %v267, 176
          %v290 = vadd.s32 %v267, 184
          %v291 = vadd.s32 %v267, 192
          %v292 = vadd.s32 %v267, 200
          %v293 = vadd.s32 %v267, 208
          %v294 = vadd.s32 %v267, 216
          %v295 = vadd.s32 %v267, 224
          %v296 = vadd.s32 %v267, 232
          %v297 = vadd.s32 %v267, 240
          %v298 = vadd.s32 %v267, 248
          %v299 = vadd.s32 %v267, 256
          %v300 = vadd.s32 %v267, 264
          %v301 = vadd.s32 %v267, 272
          %v302 = vadd.s32 %v267, 280
          %v303 = vadd.s32 %v267, 288
          %v304 = vstv %s265
          %vm305 = vcmp.lt.s32.totalorder %v267, %v304
          %vm306 = vcmp.lt.s32.totalorder %v268, %v304
          %vm307 = vcmp.lt.s32.totalorder %v269, %v304
          %vm308 = vcmp.lt.s32.totalorder %v270, %v304
          %vm309 = vcmp.lt.s32.totalorder %v271, %v304
          %vm310 = vcmp.lt.s32.totalorder %v272, %v304
          %vm311 = vcmp.lt.s32.totalorder %v273, %v304
          %vm312 = vcmp.lt.s32.totalorder %v274, %v304
          %vm313 = vcmp.lt.s32.totalorder %v275, %v304
          %vm314 = vcmp.lt.s32.totalorder %v276, %v304
          %vm315 = vcmp.lt.s32.totalorder %v277, %v304
          %vm316 = vcmp.lt.s32.totalorder %v278, %v304
          %vm317 = vcmp.lt.s32.totalorder %v279, %v304
          %vm318 = vcmp.lt.s32.totalorder %v280, %v304
          %vm319 = vcmp.lt.s32.totalorder %v281, %v304
          %vm320 = vcmp.lt.s32.totalorder %v282, %v304
          %vm321 = vcmp.lt.s32.totalorder %v283, %v304
          %vm322 = vcmp.lt.s32.totalorder %v284, %v304
          %vm323 = vcmp.lt.s32.totalorder %v285, %v304
          %vm324 = vcmp.lt.s32.totalorder %v286, %v304
          %vm325 = vcmp.lt.s32.totalorder %v287, %v304
          %vm326 = vcmp.lt.s32.totalorder %v288, %v304
          %vm327 = vcmp.lt.s32.totalorder %v289, %v304
          %vm328 = vcmp.lt.s32.totalorder %v290, %v304
          %vm329 = vcmp.lt.s32.totalorder %v291, %v304
          %vm330 = vcmp.lt.s32.totalorder %v292, %v304
          %vm331 = vcmp.lt.s32.totalorder %v293, %v304
          %vm332 = vcmp.lt.s32.totalorder %v294, %v304
          %vm333 = vcmp.lt.s32.totalorder %v295, %v304
          %vm334 = vcmp.lt.s32.totalorder %v296, %v304
          %vm335 = vcmp.lt.s32.totalorder %v297, %v304
          %vm336 = vcmp.lt.s32.totalorder %v298, %v304
          %vm337 = vcmp.lt.s32.totalorder %v299, %v304
          %vm338 = vcmp.lt.s32.totalorder %v300, %v304
          %vm339 = vcmp.lt.s32.totalorder %v301, %v304
          %vm340 = vcmp.lt.s32.totalorder %v302, %v304
          %vm341 = vcmp.lt.s32.totalorder %v303, %v304
          %v342 = vsel %vm305, 1, 0
          %v343 = vsel %vm306, 1, 0
          %v344 = vsel %vm307, 1, 0
          %v345 = vsel %vm308, 1, 0
          %v346 = vsel %vm309, 1, 0
          %v347 = vsel %vm310, 1, 0
          %v348 = vsel %vm311, 1, 0
          %v349 = vsel %vm312, 1, 0
          %v350 = vsel %vm313, 1, 0
          %v351 = vsel %vm314, 1, 0
          %v352 = vsel %vm315, 1, 0
          %v353 = vsel %vm316, 1, 0
          %v354 = vsel %vm317, 1, 0
          %v355 = vsel %vm318, 1, 0
          %v356 = vsel %vm319, 1, 0
          %v357 = vsel %vm320, 1, 0
          %v358 = vsel %vm321, 1, 0
          %v359 = vsel %vm322, 1, 0
          %v360 = vsel %vm323, 1, 0
          %v361 = vsel %vm324, 1, 0
          %v362 = vsel %vm325, 1, 0
          %v363 = vsel %vm326, 1, 0
          %v364 = vsel %vm327, 1, 0
          %v365 = vsel %vm328, 1, 0
          %v366 = vsel %vm329, 1, 0
          %v367 = vsel %vm330, 1, 0
          %v368 = vsel %vm331, 1, 0
          %v369 = vsel %vm332, 1, 0
          %v370 = vsel %vm333, 1, 0
          %v371 = vsel %vm334, 1, 0
          %v372 = vsel %vm335, 1, 0
          %v373 = vsel %vm336, 1, 0
          %v374 = vsel %vm337, 1, 0
          %v375 = vsel %vm338, 1, 0
          %v376 = vsel %vm339, 1, 0
          %v377 = vsel %vm340, 1, 0
          %v378 = vsel %vm341, 1, 0
          %vm379 = vcmp.eq.s32.totalorder %v342, 1
          %vm380 = vcmp.eq.s32.totalorder %v343, 1
          %vm381 = vcmp.eq.s32.totalorder %v344, 1
          %vm382 = vcmp.eq.s32.totalorder %v345, 1
          %vm383 = vcmp.eq.s32.totalorder %v346, 1
          %vm384 = vcmp.eq.s32.totalorder %v347, 1
          %vm385 = vcmp.eq.s32.totalorder %v348, 1
          %vm386 = vcmp.eq.s32.totalorder %v349, 1
          %vm387 = vcmp.eq.s32.totalorder %v350, 1
          %vm388 = vcmp.eq.s32.totalorder %v351, 1
          %vm389 = vcmp.eq.s32.totalorder %v352, 1
          %vm390 = vcmp.eq.s32.totalorder %v353, 1
          %vm391 = vcmp.eq.s32.totalorder %v354, 1
          %vm392 = vcmp.eq.s32.totalorder %v355, 1
          %vm393 = vcmp.eq.s32.totalorder %v356, 1
          %vm394 = vcmp.eq.s32.totalorder %v357, 1
          %vm395 = vcmp.eq.s32.totalorder %v358, 1
          %vm396 = vcmp.eq.s32.totalorder %v359, 1
          %vm397 = vcmp.eq.s32.totalorder %v360, 1
          %vm398 = vcmp.eq.s32.totalorder %v361, 1
          %vm399 = vcmp.eq.s32.totalorder %v362, 1
          %vm400 = vcmp.eq.s32.totalorder %v363, 1
          %vm401 = vcmp.eq.s32.totalorder %v364, 1
          %vm402 = vcmp.eq.s32.totalorder %v365, 1
          %vm403 = vcmp.eq.s32.totalorder %v366, 1
          %vm404 = vcmp.eq.s32.totalorder %v367, 1
          %vm405 = vcmp.eq.s32.totalorder %v368, 1
          %vm406 = vcmp.eq.s32.totalorder %v369, 1
          %vm407 = vcmp.eq.s32.totalorder %v370, 1
          %vm408 = vcmp.eq.s32.totalorder %v371, 1
          %vm409 = vcmp.eq.s32.totalorder %v372, 1
          %vm410 = vcmp.eq.s32.totalorder %v373, 1
          %vm411 = vcmp.eq.s32.totalorder %v374, 1
          %vm412 = vcmp.eq.s32.totalorder %v375, 1
          %vm413 = vcmp.eq.s32.totalorder %v376, 1
          %vm414 = vcmp.eq.s32.totalorder %v377, 1
          %vm415 = vcmp.eq.s32.totalorder %v378, 1
          %v416 = vsel %vm379, %v178, 0.0
          %v417 = vsel %vm380, %v179, 0.0
          %v418 = vsel %vm381, %v180, 0.0
          %v419 = vsel %vm382, %v181, 0.0
          %v420 = vsel %vm383, %v182, 0.0
          %v421 = vsel %vm384, %v183, 0.0
          %v422 = vsel %vm385, %v184, 0.0
          %v423 = vsel %vm386, %v185, 0.0
          %v424 = vsel %vm387, %v186, 0.0
          %v425 = vsel %vm388, %v187, 0.0
          %v426 = vsel %vm389, %v188, 0.0
          %v427 = vsel %vm390, %v189, 0.0
          %v428 = vsel %vm391, %v190, 0.0
          %v429 = vsel %vm392, %v191, 0.0
          %v430 = vsel %vm393, %v192, 0.0
          %v431 = vsel %vm394, %v193, 0.0
          %v432 = vsel %vm395, %v194, 0.0
          %v433 = vsel %vm396, %v195, 0.0
          %v434 = vsel %vm397, %v196, 0.0
          %v435 = vsel %vm398, %v197, 0.0
          %v436 = vsel %vm399, %v198, 0.0
          %v437 = vsel %vm400, %v199, 0.0
          %v438 = vsel %vm401, %v200, 0.0
          %v439 = vsel %vm402, %v201, 0.0
          %v440 = vsel %vm403, %v202, 0.0
          %v441 = vsel %vm404, %v203, 0.0
          %v442 = vsel %vm405, %v204, 0.0
          %v443 = vsel %vm406, %v205, 0.0
          %v444 = vsel %vm407, %v206, 0.0
          %v445 = vsel %vm408, %v207, 0.0
          %v446 = vsel %vm409, %v208, 0.0
          %v447 = vsel %vm410, %v209, 0.0
          %v448 = vsel %vm411, %v210, 0.0
          %v449 = vsel %vm412, %v211, 0.0
          %v450 = vsel %vm413, %v212, 0.0
          %v451 = vsel %vm414, %v213, 0.0
          %v452 = vsel %vm415, %v214, 0.0
          %v453 = vld [vmem:[#allocation2] sm:$0xff]
          %v454 = vadd.f32 %v416, %v417
          %v455 = vadd.f32 %v454, %v418
          %v456 = vadd.f32 %v455, %v419
          %v457 = vadd.f32 %v456, %v420
          %v458 = vadd.f32 %v457, %v421
          %v459 = vadd.f32 %v458, %v422
          %v460 = vadd.f32 %v459, %v423
          %v461 = vadd.f32 %v460, %v424
          %v462 = vadd.f32 %v461, %v425
          %v463 = vadd.f32 %v462, %v426
          %v464 = vadd.f32 %v463, %v427
          %v465 = vadd.f32 %v464, %v428
          %v466 = vadd.f32 %v465, %v429
          %v467 = vadd.f32 %v466, %v430
          %v468 = vadd.f32 %v467, %v431
          %v469 = vadd.f32 %v468, %v432
          %v470 = vadd.f32 %v469, %v433
          %v471 = vadd.f32 %v470, %v434
          %v472 = vadd.f32 %v471, %v435
          %v473 = vadd.f32 %v472, %v436
          %v474 = vadd.f32 %v473, %v437
          %v475 = vadd.f32 %v474, %v438
          %v476 = vadd.f32 %v475, %v439
          %v477 = vadd.f32 %v476, %v440
          %v478 = vadd.f32 %v477, %v441
          %v479 = vadd.f32 %v478, %v442
          %v480 = vadd.f32 %v479, %v443
          %v481 = vadd.f32 %v480, %v444
          %v482 = vadd.f32 %v481, %v445
          %v483 = vadd.f32 %v482, %v446
          %v484 = vadd.f32 %v483, %v447
          %v485 = vadd.f32 %v484, %v448
          %v486 = vadd.f32 %v485, %v449
          %v487 = vadd.f32 %v486, %v450
          %v488 = vadd.f32 %v487, %v451
          %v489 = vadd.f32 %v488, %v452
          %v490 = vadd.f32 %v453, %v489
          %491 = vst [vmem:[#allocation2] sm:$0xff] %v490
        $region40: #{tpu_custom_call.1} parent=23 // pred_fallthru
          _
        %p492 = scmp.eq.s32.totalorder %s25, 1
        // Predicated region
        $region41: #{tpu_custom_call.1} parent=23 // pred_check
          %p493 = pneg %p492
        $region42: #{tpu_custom_call.1} parent=23 // pred_check_branch
          %495 = sbr.rel (%p493) target = $region44
        $region43: #{tpu_custom_call.1} parent=23 // pred_region
          %v496 = vld [vmem:[#allocation2] sm:$0xff]
          %v497 = vrot.slane %v496, 4
          %v498 = vadd.f32 %v496, %v497
          %v499 = vrot.slane %v498, 2
          %v500 = vadd.f32 %v498, %v499
          %v501 = vrot.slane %v500, 1
          %v502 = vadd.f32 %v500, %v501
          %503 = vst [vmem:[%s167] sm:$0x1] %v502
        $region44: #{tpu_custom_call.1} parent=23 // pred_fallthru
          _
        %s504 = sand.u32 %s77, 1
        %s505 = scalar_lea.sflag [#allocation5], %s504
        %s506 = sand.u32 %s77, 1
        %s507 = scalar_lea.vmem [#allocation6], %s506
        // Predicated region
        $region45: #{tpu_custom_call.1} parent=23 // pred_check
          %p508 = pneg %p87
        $region46: #{tpu_custom_call.1} parent=23 // pred_check_branch
          %510 = sbr.rel (%p508) target = $region48
        $region47: #{tpu_custom_call.1} parent=23 // pred_region
          %s512 = ssub.s32 16, 16
          %513 = vsyncadd %s505, %s512
          %s514 = sadd.s32 %s24, %s23
          %s515 = smul.addr %s514, 16
          %s516 = scalar_lea.hbm %s1, %s515
          %s518 = sshll.u32 %s507, 4
          %s519 = int_to_ptr.vmem [resolvable:$true] %s518
          %521 = dma.vmem_to_hbm [thread:$0]  %s519, 16, %s516, %s505
        $region48: #{tpu_custom_call.1} parent=23 // pred_fallthru
          _
      $region24: #{tpu_custom_call.1} parent=5 // pred_fallthru
        _
      %p522 = scmp.le.s32.totalorder 2, %s13
      // Predicated region
      $region49: #{tpu_custom_call.1} parent=5 // pred_check
        %p523 = pneg %p522
      $region50: #{tpu_custom_call.1} parent=5 // pred_check_branch
        %525 = sbr.rel (%p523) target = $region52
      $region51: #{tpu_custom_call.1} parent=5 // pred_region
        %s526 = ssub.s32 %s13, 2
        // Predicated region
        $region53: #{tpu_custom_call.1} parent=51 // pred_check
          %p527 = pneg %p93
        $region54: #{tpu_custom_call.1} parent=51 // pred_check_branch
          %529 = sbr.rel (%p527) target = $region56
        $region55: #{tpu_custom_call.1} parent=51 // pred_region
          %s530 = sand.u32 %s78, 1
          %s531 = scalar_lea.sflag [#allocation5], %s530
          %s532 = sand.u32 %s78, 1
          %s533 = scalar_lea.vmem [#allocation6], %s532
          %534 = dma.done %s531, 16
        $region56: #{tpu_custom_call.1} parent=51 // pred_fallthru
          _
      $region52: #{tpu_custom_call.1} parent=5 // pred_fallthru
        _
    $region6: #{tpu_custom_call.1} parent=1 // loop_footer
      %s17 = sadd.s32 1, %s13
    $region7: #{tpu_custom_call.1} parent=1 // loop_footer_branch
      %12 = sbr.rel target = $region3
    $region8: #{tpu_custom_call.1} parent=1 // loop_exit
      _
    %535 = vsyncpa [#allocation4], 1
    %s536 = scalar_lea.sflag [#allocation4], 1
    %537 = vsyncpa %s536, 1
    %538 = vsyncpa [#allocation5], 1
    %s539 = scalar_lea.sflag [#allocation5], 1
    %540 = vsyncpa %s539, 1

</llo_original>
